<compile_context>
chip_gen: v7x
topology: tpu7x:2x2x1
jax: 0.10.0
libtpu: 0.0.40
codegen_flags: <defaults>
</compile_context>

<pallas_src>
import jax
import jax.numpy as jnp
from jax.experimental import pallas as pl
from jax.experimental.pallas import tpu as pltpu


def _round_up(x, m):
    return (x + m - 1) // m * m


def _make_exit_block_kernel(thw, lane, inv_hw):
    folds = thw // lane

    def kernel(x_ref, w1_ref, b1_ref, w2_ref, b2_ref, o_ref, acc_ref):
        k = pl.program_id(1)

        @pl.when(k == 0)
        def _init():
            acc_ref[...] = jnp.zeros_like(acc_ref)

        # Upcast after the load: HBM traffic stays at native dtype, math is f32
        # (v5e has no bf16 VPU, and the mean must accumulate in f32 anyway).
        x = x_ref[...].astype(jnp.float32)                     # (BN, C, THW)

        # Two-stage reduction: fold THW lanes down to `lane` (=128) wide with
        # elementwise VPU adds; the single cross-lane (XLU) reduce happens only
        # in the finalize, not per HW tile.
        partial = x[:, :, 0:lane]
        for f in range(1, folds):
            partial = partial + x[:, :, f * lane:(f + 1) * lane]
        acc_ref[...] += partial

        @pl.when(k == pl.num_programs(1) - 1)
        def _finalize():
            # One lane reduce; 1/(H*W) of the mean folded into the finalize.
            pooled = jnp.sum(acc_ref[...], axis=-1) * inv_hw    # (BN, C)
            # Tiny MLP epilogue, executed once per row tile.
            h = jnp.dot(pooled, w1_ref[...],
                        preferred_element_type=jnp.float32) + b1_ref[...]
            h = jnp.maximum(h, 0.0)
            out = jnp.dot(h, w2_ref[...],
                          preferred_element_type=jnp.float32) + b2_ref[...]
            o_ref[...] = out.astype(o_ref.dtype)

    return kernel


def exit_block_2d(x_nchw, w1, b1, w2, b2, *, row_tile=128, hw_tile=2048):
    """Pallas implementation of ExitBlock2D.forward.

    x_nchw: (N, C, H, W) in its native dtype (f32 or bf16)
    w1: (C, hidden), b1: (hidden,), w2: (hidden, out), b2: (out,)
    returns: (N, out) float32
    """
    assert row_tile % 8 == 0 and hw_tile % 128 == 0
    n, c, h, w = x_nchw.shape
    hw = h * w
    hidden = w1.shape[1]
    out_ch = w2.shape[1]

    # ---- HW tile: multiple of 128 that divides the (padded) HW extent, or the
    # full extent as a single block (allowed by the (8,128) rule). -------------
    if hw % 128 == 0:
        thw = min(hw, hw_tile)
        while hw % thw:
            thw -= 128
        hw_pad = hw
    elif hw <= hw_tile:
        thw = hw                      # single full-extent block
        hw_pad = hw
    else:
        thw = hw_tile
        hw_pad = _round_up(hw, thw)   # zero-pad: zeros don't change the sum
    lane = 128 if thw % 128 == 0 else thw

    # ---- Row (sample) tile: whole batch if small, else a multiple of 8. ------
    if n <= row_tile:
        bn = n
        n_pad = n
    else:
        bn = row_tile
        n_pad = _round_up(n, bn)

    # ---- Reshape; pad only when strictly needed; keep native dtype. ----------
    x3 = x_nchw.reshape(n, c, hw)
    if hw_pad != hw:
        x3 = jnp.pad(x3, ((0, 0), (0, 0), (0, hw_pad - hw)))
    if n_pad != n:
        x3 = jnp.pad(x3, ((0, n_pad - n), (0, 0), (0, 0)))

    w1f = w1.astype(jnp.float32)
    w2f = w2.astype(jnp.float32)
    b1f = b1.reshape(1, hidden).astype(jnp.float32)
    b2f = b2.reshape(1, out_ch).astype(jnp.float32)

    grid = (n_pad // bn, hw_pad // thw)
    kernel = _make_exit_block_kernel(thw, lane, 1.0 / float(hw))

    block_bytes = bn * c * thw * x3.dtype.itemsize
    vmem_limit = int(min(64 * 2**20, max(32 * 2**20, 6 * block_bytes)))

    cost = pl.CostEstimate(
        flops=int(n_pad * c * hw_pad
                  + 2 * n_pad * (c * hidden + hidden * out_ch)),
        transcendentals=0,
        bytes_accessed=int(x3.size * x3.dtype.itemsize
                           + 4 * (w1f.size + b1f.size + w2f.size + b2f.size)
                           + 4 * n_pad * out_ch),
    )

    out = pl.pallas_call(
        kernel,
        out_shape=jax.ShapeDtypeStruct((n_pad, out_ch), jnp.float32),
        grid_spec=pltpu.PrefetchScalarGridSpec(
            num_scalar_prefetch=0,
            grid=grid,
            in_specs=[
                pl.BlockSpec((bn, c, thw), lambda i, k: (i, 0, k)),   # x
                pl.BlockSpec((c, hidden), lambda i, k: (0, 0)),       # w1
                pl.BlockSpec((1, hidden), lambda i, k: (0, 0)),       # b1
                pl.BlockSpec((hidden, out_ch), lambda i, k: (0, 0)),  # w2
                pl.BlockSpec((1, out_ch), lambda i, k: (0, 0)),       # b2
            ],
            out_specs=pl.BlockSpec((bn, out_ch), lambda i, k: (i, 0)),
            scratch_shapes=[pltpu.VMEM((bn, c, lane), jnp.float32)],
        ),
        compiler_params=pltpu.CompilerParams(
            dimension_semantics=("parallel", "arbitrary"),
            vmem_limit_bytes=vmem_limit,
        ),
        cost_estimate=cost,
    )(x3, w1f, b1f, w2f, b2f)

    return out[:n]


def _reference(x_nchw, w1, b1, w2, b2):
    pooled = jnp.mean(x_nchw.astype(jnp.float32), axis=(2, 3))  # avgpool+flatten
    h = jnp.maximum(pooled @ w1 + b1, 0.0)                      # Linear + ReLU
    return h @ w2 + b2                                          # Linear


if __name__ == "__main__":
    # Shapes implied by the module: in_channels=4, hidden_sizes=32, out_channels=8
    N, C, H, W = 2, 4, 16, 16
    HIDDEN, OUT = 32, 8

    key = jax.random.PRNGKey(0)
    kx, kw1, kb1, kw2, kb2 = jax.random.split(key, 5)

    x = jax.random.normal(kx, (N, C, H, W), dtype=jnp.float32)
    # PyTorch Linear weight is (out, in); we store the (in, out) layout used
    # directly by the matmul.
    w1 = jax.random.normal(kw1, (C, HIDDEN), dtype=jnp.float32) * 0.1
    b1 = jax.random.normal(kb1, (HIDDEN,), dtype=jnp.float32) * 0.1
    w2 = jax.random.normal(kw2, (HIDDEN, OUT), dtype=jnp.float32) * 0.1
    b2 = jax.random.normal(kb2, (OUT,), dtype=jnp.float32) * 0.1

    y = exit_block_2d(x, w1, b1, w2, b2)
    y = jax.block_until_ready(y)

    y_ref = _reference(x, w1, b1, w2, b2)
    assert y.shape == (N, OUT)
    assert jnp.allclose(y, y_ref, atol=1e-4, rtol=1e-4), "mismatch vs reference"

    print("KERNEL_OK")
</pallas_src>

<mosaic_0001>
module attributes {stable_mosaic.version = 11 : i64} {
  func.func @kernel(%arg0: i32, %arg1: i32, %arg2: memref<2x4x256xf32, #tpu.memory_space<vmem>>, %arg3: memref<4x32xf32, #tpu.memory_space<vmem>>, %arg4: memref<1x32xf32, #tpu.memory_space<vmem>>, %arg5: memref<32x8xf32, #tpu.memory_space<vmem>>, %arg6: memref<1x8xf32, #tpu.memory_space<vmem>>, %arg7: memref<2x8xf32, #tpu.memory_space<vmem>>, %arg8: memref<2x4x128xf32, #tpu.memory_space<vmem>>) attributes {dimension_semantics = [#tpu.dimension_semantics<parallel>, #tpu.dimension_semantics<arbitrary>], iteration_bounds = array<i64: 1, 1>, scalar_prefetch = 0 : i64, scratch_operands = 1 : i64, tpu.core_type = #tpu.core_type<tc>, window_params = [{transform_indices = @transform_0, window_bounds = array<i64: 2, 4, 256>}, {pipeline_mode = #tpu.pipeline_mode<synchronous>, transform_indices = @transform_1, window_bounds = array<i64: 4, 32>}, {pipeline_mode = #tpu.pipeline_mode<synchronous>, transform_indices = @transform_2, window_bounds = array<i64: 1, 32>}, {pipeline_mode = #tpu.pipeline_mode<synchronous>, transform_indices = @transform_3, window_bounds = array<i64: 32, 8>}, {pipeline_mode = #tpu.pipeline_mode<synchronous>, transform_indices = @transform_4, window_bounds = array<i64: 1, 8>}, {transform_indices = @transform_5, window_bounds = array<i64: 2, 8>}]} {
    %c0_i32 = arith.constant 0 : i32
    %0 = arith.cmpi eq, %arg1, %c0_i32 : i32
    %1 = arith.extui %0 : i1 to i32
    %c0_i32_0 = arith.constant 0 : i32
    %2 = arith.cmpi ne, %1, %c0_i32_0 : i32
    scf.if %2 {
      %cst = arith.constant 0.000000e+00 : f32
      %13 = vector.broadcast %cst : f32 to vector<2x4x128xf32>
      %c0_11 = arith.constant 0 : index
      %c0_12 = arith.constant 0 : index
      %c0_13 = arith.constant 0 : index
      %14 = vector.load %arg8[%c0_11, %c0_12, %c0_13] : memref<2x4x128xf32, #tpu.memory_space<vmem>>, vector<2x4x128xf32>
      tpu.vector_store %arg8[%c0_11, %c0_12, %c0_13], %13 {strides = array<i32>} : memref<2x4x128xf32, #tpu.memory_space<vmem>>, vector<2x4x128xf32>,
    } else {
    }
    %c0 = arith.constant 0 : index
    %c0_1 = arith.constant 0 : index
    %c0_2 = arith.constant 0 : index
    %3 = vector.load %arg2[%c0, %c0_1, %c0_2] : memref<2x4x256xf32, #tpu.memory_space<vmem>>, vector<2x4x256xf32>
    %4 = vector.extract_strided_slice %3 {offsets = [0, 0, 0], sizes = [2, 4, 128], strides = [1, 1, 1]} : vector<2x4x256xf32> to vector<2x4x128xf32>
    %5 = vector.extract_strided_slice %3 {offsets = [0, 0, 128], sizes = [2, 4, 128], strides = [1, 1, 1]} : vector<2x4x256xf32> to vector<2x4x128xf32>
    %6 = arith.addf %4, %5 : vector<2x4x128xf32>
    %c0_3 = arith.constant 0 : index
    %c0_4 = arith.constant 0 : index
    %c0_5 = arith.constant 0 : index
    %7 = vector.load %arg8[%c0_3, %c0_4, %c0_5] : memref<2x4x128xf32, #tpu.memory_space<vmem>>, vector<2x4x128xf32>
    %8 = arith.addf %7, %6 : vector<2x4x128xf32>
    %c0_6 = arith.constant 0 : index
    %c0_7 = arith.constant 0 : index
    %c0_8 = arith.constant 0 : index
    %9 = vector.load %arg8[%c0_6, %c0_7, %c0_8] : memref<2x4x128xf32, #tpu.memory_space<vmem>>, vector<2x4x128xf32>
    tpu.vector_store %arg8[%c0_6, %c0_7, %c0_8], %8 {strides = array<i32>} : memref<2x4x128xf32, #tpu.memory_space<vmem>>, vector<2x4x128xf32>,
    %c0_i32_9 = arith.constant 0 : i32
    %10 = arith.cmpi eq, %arg1, %c0_i32_9 : i32
    %11 = arith.extui %10 : i1 to i32
    %c0_i32_10 = arith.constant 0 : i32
    %12 = arith.cmpi ne, %11, %c0_i32_10 : i32
    scf.if %12 {
      %c0_11 = arith.constant 0 : index
      %c0_12 = arith.constant 0 : index
      %c0_13 = arith.constant 0 : index
      %13 = vector.load %arg8[%c0_11, %c0_12, %c0_13] : memref<2x4x128xf32, #tpu.memory_space<vmem>>, vector<2x4x128xf32>
      %cst = arith.constant dense<0.000000e+00> : vector<2x4xf32>
      %14 = vector.multi_reduction <add>, %13, %cst [2] : vector<2x4x128xf32> to vector<2x4xf32>
      %cst_14 = arith.constant 3.906250e-03 : f32
      %15 = vector.broadcast %cst_14 : f32 to vector<2x4xf32>
      %16 = arith.mulf %14, %15 : vector<2x4xf32>
      %c0_15 = arith.constant 0 : index
      %c0_16 = arith.constant 0 : index
      %17 = vector.load %arg3[%c0_15, %c0_16] : memref<4x32xf32, #tpu.memory_space<vmem>>, vector<4x32xf32>
      %cst_17 = arith.constant dense<0.000000e+00> : vector<2x32xf32>
      %18 = tpu.matmul %16, %17, %cst_17 {dimension_numbers = #tpu.dot_dimension_numbers<[1], [0], [0], [1], [0, 0, 1, 1], [], []>} : vector<2x4xf32>, vector<4x32xf32>, vector<2x32xf32> -> vector<2x32xf32>
      %c0_18 = arith.constant 0 : index
      %c0_19 = arith.constant 0 : index
      %19 = vector.load %arg4[%c0_18, %c0_19] : memref<1x32xf32, #tpu.memory_space<vmem>>, vector<1x32xf32>
      %20 = vector.broadcast %19 : vector<1x32xf32> to vector<2x32xf32>
      %21 = arith.addf %18, %20 : vector<2x32xf32>
      %cst_20 = arith.constant 0.000000e+00 : f32
      %22 = vector.broadcast %cst_20 : f32 to vector<2x32xf32>
      %23 = arith.maximumf %21, %22 : vector<2x32xf32>
      %c0_21 = arith.constant 0 : index
      %c0_22 = arith.constant 0 : index
      %24 = vector.load %arg5[%c0_21, %c0_22] : memref<32x8xf32, #tpu.memory_space<vmem>>, vector<32x8xf32>
      %cst_23 = arith.constant dense<0.000000e+00> : vector<2x8xf32>
      %25 = tpu.matmul %23, %24, %cst_23 {dimension_numbers = #tpu.dot_dimension_numbers<[1], [0], [0], [1], [0, 0, 1, 1], [], []>} : vector<2x32xf32>, vector<32x8xf32>, vector<2x8xf32> -> vector<2x8xf32>
      %c0_24 = arith.constant 0 : index
      %c0_25 = arith.constant 0 : index
      %26 = vector.load %arg6[%c0_24, %c0_25] : memref<1x8xf32, #tpu.memory_space<vmem>>, vector<1x8xf32>
      %27 = vector.broadcast %26 : vector<1x8xf32> to vector<2x8xf32>
      %28 = arith.addf %25, %27 : vector<2x8xf32>
      %c0_26 = arith.constant 0 : index
      %c0_27 = arith.constant 0 : index
      %29 = vector.load %arg7[%c0_26, %c0_27] : memref<2x8xf32, #tpu.memory_space<vmem>>, vector<2x8xf32>
      tpu.vector_store %arg7[%c0_26, %c0_27], %28 {strides = array<i32>} : memref<2x8xf32, #tpu.memory_space<vmem>>, vector<2x8xf32>,
    } else {
    }
    return
  }
  func.func @transform_0(%arg0: i32, %arg1: i32) -> (i32, i32, i32) {
    %c0_i32 = arith.constant 0 : i32
    %c0_i32_0 = arith.constant 0 : i32
    return %arg0, %c0_i32, %arg1 : i32, i32, i32
  }
  func.func @transform_1(%arg0: i32, %arg1: i32) -> (i32, i32) {
    %c0_i32 = arith.constant 0 : i32
    %c0_i32_0 = arith.constant 0 : i32
    %c0_i32_1 = arith.constant 0 : i32
    return %c0_i32, %c0_i32_0 : i32, i32
  }
  func.func @transform_2(%arg0: i32, %arg1: i32) -> (i32, i32) {
    %c0_i32 = arith.constant 0 : i32
    %c0_i32_0 = arith.constant 0 : i32
    %c0_i32_1 = arith.constant 0 : i32
    return %c0_i32, %c0_i32_0 : i32, i32
  }
  func.func @transform_3(%arg0: i32, %arg1: i32) -> (i32, i32) {
    %c0_i32 = arith.constant 0 : i32
    %c0_i32_0 = arith.constant 0 : i32
    %c0_i32_1 = arith.constant 0 : i32
    return %c0_i32, %c0_i32_0 : i32, i32
  }
  func.func @transform_4(%arg0: i32, %arg1: i32) -> (i32, i32) {
    %c0_i32 = arith.constant 0 : i32
    %c0_i32_0 = arith.constant 0 : i32
    %c0_i32_1 = arith.constant 0 : i32
    return %c0_i32, %c0_i32_0 : i32, i32
  }
  func.func @transform_5(%arg0: i32, %arg1: i32) -> (i32, i32) {
    %c0_i32 = arith.constant 0 : i32
    %c0_i32_0 = arith.constant 0 : i32
    return %arg0, %c0_i32 : i32, i32
  }
}

</mosaic_0001>

<llo_original>
// kernel: tpu_custom_call.1
$region0: #{tpu_custom_call.1}
  #allocation0 [shape = 'u32[]', space=smem, size = 0x4, offset = 0x4, fixed_abs, tag = 'smem constant byte address 0x4 - core index']
  #allocation1 [shape = 'u32[144,128]{1,0:T(1,128)}', space=vmem, size = 0x12000, scoped, tag = 'internal scratch']
  #allocation2 [shape = 'f32[2,4,128]{2,1,0:T(4,128)}', space=vmem, size = 0x1000, scoped, tag = 'scratch operand']
  %s0 = inlined_call_operand.vmem [shape: f32[2,4,256], index: 0, kind: input, shape index: {}]
  %s1 = inlined_call_operand.vmem [shape: f32[4,32], index: 1, kind: input, shape index: {}]
  %s2 = inlined_call_operand.vmem [shape: f32[1,32], index: 2, kind: input, shape index: {}]
  %s3 = inlined_call_operand.vmem [shape: f32[32,8], index: 3, kind: input, shape index: {}]
  %s4 = inlined_call_operand.vmem [shape: f32[1,8], index: 4, kind: input, shape index: {}]
  %s5 = inlined_call_operand.hbm [shape: f32[2,8], index: 5, kind: output, shape index: {}]
  %s6 = sld [smem:[#allocation0]]
  $region38: #{tpu_custom_call.1} parent=0
    _
  %s8 = ssub.s32 1, %s6
  %s9 = scalar_select 0, %s8, %s6
  $region1: #{tpu_custom_call.1} parent=0
    #allocation3 [shape = 'u8[1024]{0}', space=vmem, size = 0x400, scoped, tag = 'output window, operand 0, single buffered']
    #allocation4 [shape = 's32[1]{0}', space=sflag, size = 0x4, scoped, tag = 'scoped memory for tpu_custom_call.1']
    %10 = vsyncpa [#allocation4], 0
    // Predicated region
    $region2: #{tpu_custom_call.1} parent=1 // pred_check
      _
    $region3: #{tpu_custom_call.1} parent=1 // pred_check_branch
      %12 = sbr.rel (0) target = $region5
    $region4: #{tpu_custom_call.1} parent=1 // pred_region
      _
    $region5: #{tpu_custom_call.1} parent=1 // pred_fallthru
      _
    // Predicated region
    $region6: #{tpu_custom_call.1} parent=1 // pred_check
      _
    $region7: #{tpu_custom_call.1} parent=1 // pred_check_branch
      %14 = sbr.rel (0) target = $region9
    $region8: #{tpu_custom_call.1} parent=1 // pred_region
      _
    $region9: #{tpu_custom_call.1} parent=1 // pred_fallthru
      _
    // Predicated region
    $region10: #{tpu_custom_call.1} parent=1 // pred_check
      _
    $region11: #{tpu_custom_call.1} parent=1 // pred_check_branch
      %16 = sbr.rel (0) target = $region13
    $region12: #{tpu_custom_call.1} parent=1 // pred_region
      _
    $region13: #{tpu_custom_call.1} parent=1 // pred_fallthru
      _
    // Predicated region
    $region14: #{tpu_custom_call.1} parent=1 // pred_check
      _
    $region15: #{tpu_custom_call.1} parent=1 // pred_check_branch
      %18 = sbr.rel (0) target = $region17
    $region16: #{tpu_custom_call.1} parent=1 // pred_region
      _
    $region17: #{tpu_custom_call.1} parent=1 // pred_fallthru
      _
    // Predicated region
    $region18: #{tpu_custom_call.1} parent=1 // pred_check
      _
    $region19: #{tpu_custom_call.1} parent=1 // pred_check_branch
      %20 = sbr.rel (0) target = $region21
    $region20: #{tpu_custom_call.1} parent=1 // pred_region
      _
    $region21: #{tpu_custom_call.1} parent=1 // pred_fallthru
      _
    %p21 = scmp.eq.s32.totalorder 0, 0
    // Predicated region
    $region22: #{tpu_custom_call.1} parent=1 // pred_check
      %p22 = pneg %p21
    $region23: #{tpu_custom_call.1} parent=1 // pred_check_branch
      %24 = sbr.rel (%p22) target = $region25
    $region24: #{tpu_custom_call.1} parent=1 // pred_region
      %25 = vst [vmem:[#allocation2] sm:$0xf] 0.0
      %26 = vst [vmem:[#allocation2 + $0x4] sm:$0xf] 0.0
    $region25: #{tpu_custom_call.1} parent=1 // pred_fallthru
      _
    %v27 = vld [vmem:[%s0] sm:$0xff]
    %v28 = vld [vmem:[%s0 + $0x8] sm:$0xff]
    %v31 = vrot.slane %v27, 4
    %v32 = vrot.slane %v28, 4
    %v35 = vadd.f32 %v27, %v31
    %v36 = vadd.f32 %v28, %v32
    %v37 = vld [vmem:[#allocation2] sm:$0xf]
    %v38 = vld [vmem:[#allocation2 + $0x4] sm:$0xf]
    %v39 = vadd.f32 %v37, %v35
    %v40 = vadd.f32 %v38, %v36
    %41 = vst [vmem:[#allocation2] sm:$0xf] %v39
    %42 = vst [vmem:[#allocation2 + $0x4] sm:$0xf] %v40
    // Predicated region
    $region26: #{tpu_custom_call.1} parent=1 // pred_check
      %p43 = pneg %p21
    $region27: #{tpu_custom_call.1} parent=1 // pred_check_branch
      %45 = sbr.rel (%p43) target = $region29
    $region28: #{tpu_custom_call.1} parent=1 // pred_region
      %v46 = vld [vmem:[#allocation2] sm:$0xf]
      %v47 = vld [vmem:[#allocation2 + $0x4] sm:$0xf]
      %vm48 = vcmask 1043456
      %v49 = vsel %vm48, %v46, 0.0
      %50 = vadd.xlane.f32.xlu0 %v49
      %v51 = vpop.xlane.xlu0 %50
      %v52 = vsel %vm48, %v47, 0.0
      %53 = vadd.xlane.f32.xlu0 %v52
      %v54 = vpop.xlane.xlu0 %53
      %v55 = vmul.f32 %v51, 0.00390625
      %v56 = vmul.f32 %v54, 0.00390625
      %v57 = vld [vmem:[%s1] sm:$0xf]
      %v58 = vld [vmem:[%s2] sm:$0x1]
      %v60 = vlaneseq
      %v61 = vshrl.u32 %v60, 7
      %v62 = vsub.s32 0, %v61
      %v63 = vrot.slane %v58, %v62
      %v67 = vlaneseq
      %v68 = vand.u32 %v67, 127
      %v69 = vlaneseq
      %v70 = vshrl.u32 %v69, 7
      %v71 = vsub.s32 %v68, %v70
      %v72 = vrot.slane %v55, %v71
      %v73 = vlaneseq
      %v74 = vshrl.u32 %v73, 7
      %v75 = vsub.s32 %v68, %v74
      %v76 = vrot.slane %v56, %v75
      %vm77 = vcmask 1041409
      %v78 = vsel %vm77, %v76, %v72
      %vm79 = vcmask 31744
      %v80 = vsel %vm79, %v78, 0
      %v83 = vsel %vm48, %v57, 0
      %85 = vmatprep.subr.mxu0 0.0
      %86 = vmatpush1.msra.mxu0 %v83
      %87 = vmatprep.subr.mxu0 0.0
      %88 = vmatpush1.msra.mxu0 0.0
      %89 = vmatprep.subr.mxu0 0.0
      %90 = vmatpush1.msra.mxu0 0.0
      %91 = vmatprep.subr.mxu0 0.0
      %92 = vmatpush1.msra.mxu0 0.0
      %93 = vmatprep.subr.mxu0 0.0
      %94 = vmatpush1.msra.mxu0 0.0
      %95 = vmatprep.subr.mxu0 0.0
      %96 = vmatpush1.msra.mxu0 0.0
      %97 = vmatprep.subr.mxu0 0.0
      %98 = vmatpush1.msra.mxu0 0.0
      %99 = vmatprep.subr.mxu0 0.0
      %100 = vmatpush1.msra.mxu0 0.0
      %101 = vmatprep.subr.mxu0 0.0
      %102 = vmatpush1.msra.mxu0 0.0
      %103 = vmatprep.subr.mxu0 0.0
      %104 = vmatpush1.msra.mxu0 0.0
      %105 = vmatprep.subr.mxu0 0.0
      %106 = vmatpush1.msra.mxu0 0.0
      %107 = vmatprep.subr.mxu0 0.0
      %108 = vmatpush1.msra.mxu0 0.0
      %109 = vmatprep.subr.mxu0 0.0
      %110 = vmatpush1.msra.mxu0 0.0
      %111 = vmatprep.subr.mxu0 0.0
      %112 = vmatpush1.msra.mxu0 0.0
      %113 = vmatprep.subr.mxu0 0.0
      %114 = vmatpush1.msra.mxu0 0.0
      %115 = vmatprep.subr.mxu0 0.0
      %116 = vmatpush1.msra.mxu0 0.0
      %117 = vmatprep.subr.mxu0 0.0
      %118 = vmatpush1.msra.mxu0 0.0
      %119 = vmatprep.subr.mxu0 0.0
      %120 = vmatpush1.msra.mxu0 0.0
      %121 = vmatprep.subr.mxu0 0.0
      %122 = vmatpush1.msra.mxu0 0.0
      %123 = vmatprep.subr.mxu0 0.0
      %124 = vmatpush1.msra.mxu0 0.0
      %125 = vmatprep.subr.mxu0 0.0
      %126 = vmatpush1.msra.mxu0 0.0
      %127 = vmatprep.subr.mxu0 0.0
      %128 = vmatpush1.msra.mxu0 0.0
      %129 = vmatprep.subr.mxu0 0.0
      %130 = vmatpush1.msra.mxu0 0.0
      %131 = vmatprep.subr.mxu0 0.0
      %132 = vmatpush1.msra.mxu0 0.0
      %133 = vmatprep.subr.mxu0 0.0
      %134 = vmatpush1.msra.mxu0 0.0
      %135 = vmatprep.subr.mxu0 0.0
      %136 = vmatpush1.msra.mxu0 0.0
      %137 = vmatprep.subr.mxu0 0.0
      %138 = vmatpush1.msra.mxu0 0.0
      %139 = vmatprep.subr.mxu0 0.0
      %140 = vmatpush1.msra.mxu0 0.0
      %141 = vmatprep.subr.mxu0 0.0
      %142 = vmatpush1.msra.mxu0 0.0
      %143 = vmatprep.subr.mxu0 0.0
      %144 = vmatpush1.msra.mxu0 0.0
      %145 = vmatprep.subr.mxu0 0.0
      %146 = vmatpush1.msra.mxu0 0.0
      %147 = vmatprep.subr.mxu0 0.0
      %148 = vmatpush1.msra.mxu0 0.0
      %149 = vmatprep.mubr.f32.mxu0 0.0
      %150 = vmatmul.mubr.f32.gmra.mrb[0].mxu0 %v80
      %v151 = vpop.f32.mrb[0].mxu0
      %v152 = vadd.f32 %v63, %v151
      %v153 = vpop.f32.mrb[0].mxu0
      %154 = vdwg.mxu0
      %v155 = vmax.f32 %v152, 0.0
      %v156 = vld [vmem:[%s3] sm:$0xff]
      %v157 = vld [vmem:[%s3 + $0x8] sm:$0xff]
      %v158 = vld [vmem:[%s3 + $0x10] sm:$0xff]
      %v159 = vld [vmem:[%s3 + $0x18] sm:$0xff]
      %v160 = vld [vmem:[%s4] sm:$0x1]
      %v162 = vlaneseq
      %v163 = vshrl.u32 %v162, 7
      %v164 = vsub.s32 0, %v163
      %v165 = vrot.slane %v160, %v164
      %vm167 = vcmask 261120
      %v169 = vsel %vm167, %v155, 0
      %171 = vmatprep.subr.mxu0 0.0
      %172 = vmatpush1.msra.mxu0 %v156
      %173 = vmatprep.subr.mxu0 0.0
      %174 = vmatpush1.msra.mxu0 %v157
      %175 = vmatprep.subr.mxu0 0.0
      %176 = vmatpush1.msra.mxu0 %v158
      %177 = vmatprep.subr.mxu0 0.0
      %178 = vmatpush1.msra.mxu0 %v159
      %179 = vmatprep.subr.mxu0 0.0
      %180 = vmatpush1.msra.mxu0 0.0
      %181 = vmatprep.subr.mxu0 0.0
      %182 = vmatpush1.msra.mxu0 0.0
      %183 = vmatprep.subr.mxu0 0.0
      %184 = vmatpush1.msra.mxu0 0.0
      %185 = vmatprep.subr.mxu0 0.0
      %186 = vmatpush1.msra.mxu0 0.0
      %187 = vmatprep.subr.mxu0 0.0
      %188 = vmatpush1.msra.mxu0 0.0
      %189 = vmatprep.subr.mxu0 0.0
      %190 = vmatpush1.msra.mxu0 0.0
      %191 = vmatprep.subr.mxu0 0.0
      %192 = vmatpush1.msra.mxu0 0.0
      %193 = vmatprep.subr.mxu0 0.0
      %194 = vmatpush1.msra.mxu0 0.0
      %195 = vmatprep.subr.mxu0 0.0
      %196 = vmatpush1.msra.mxu0 0.0
      %197 = vmatprep.subr.mxu0 0.0
      %198 = vmatpush1.msra.mxu0 0.0
      %199 = vmatprep.subr.mxu0 0.0
      %200 = vmatpush1.msra.mxu0 0.0
      %201 = vmatprep.subr.mxu0 0.0
      %202 = vmatpush1.msra.mxu0 0.0
      %203 = vmatprep.subr.mxu0 0.0
      %204 = vmatpush1.msra.mxu0 0.0
      %205 = vmatprep.subr.mxu0 0.0
      %206 = vmatpush1.msra.mxu0 0.0
      %207 = vmatprep.subr.mxu0 0.0
      %208 = vmatpush1.msra.mxu0 0.0
      %209 = vmatprep.subr.mxu0 0.0
      %210 = vmatpush1.msra.mxu0 0.0
      %211 = vmatprep.subr.mxu0 0.0
      %212 = vmatpush1.msra.mxu0 0.0
      %213 = vmatprep.subr.mxu0 0.0
      %214 = vmatpush1.msra.mxu0 0.0
      %215 = vmatprep.subr.mxu0 0.0
      %216 = vmatpush1.msra.mxu0 0.0
      %217 = vmatprep.subr.mxu0 0.0
      %218 = vmatpush1.msra.mxu0 0.0
      %219 = vmatprep.subr.mxu0 0.0
      %220 = vmatpush1.msra.mxu0 0.0
      %221 = vmatprep.subr.mxu0 0.0
      %222 = vmatpush1.msra.mxu0 0.0
      %223 = vmatprep.subr.mxu0 0.0
      %224 = vmatpush1.msra.mxu0 0.0
      %225 = vmatprep.subr.mxu0 0.0
      %226 = vmatpush1.msra.mxu0 0.0
      %227 = vmatprep.subr.mxu0 0.0
      %228 = vmatpush1.msra.mxu0 0.0
      %229 = vmatprep.subr.mxu0 0.0
      %230 = vmatpush1.msra.mxu0 0.0
      %231 = vmatprep.subr.mxu0 0.0
      %232 = vmatpush1.msra.mxu0 0.0
      %233 = vmatprep.subr.mxu0 0.0
      %234 = vmatpush1.msra.mxu0 0.0
      %235 = vmatprep.mubr.f32.mxu0 0.0
      %236 = vmatmul.mubr.f32.gmra.mrb[0].mxu0 %v169
      %v237 = vpop.f32.mrb[0].mxu0
      %v238 = vadd.f32 %v165, %v237
      %v239 = vpop.f32.mrb[0].mxu0
      %240 = vdwg.mxu0
      %vm241 = vcmask 58368
      %242 = vst.msk [vmem:[#allocation3] sm:$0x3] %vm241, %v238
    $region29: #{tpu_custom_call.1} parent=1 // pred_fallthru
      _
    // Predicated region
    $region30: #{tpu_custom_call.1} parent=1 // pred_check
      _
    $region31: #{tpu_custom_call.1} parent=1 // pred_check_branch
      %244 = sbr.rel (0) target = $region33
    $region32: #{tpu_custom_call.1} parent=1 // pred_region
      %s246 = ssub.s32 32, 32
      %247 = vsyncadd [#allocation4], %s246
      %s249 = sshll.u32 [#allocation3], 4
      %s250 = int_to_ptr.vmem [resolvable:$true] %s249
      %252 = dma.vmem_to_hbm [thread:$0]  %s250, 32, %s5, [#allocation4]
    $region33: #{tpu_custom_call.1} parent=1 // pred_fallthru
      _
    // Predicated region
    $region34: #{tpu_custom_call.1} parent=1 // pred_check
      _
    $region35: #{tpu_custom_call.1} parent=1 // pred_check_branch
      %254 = sbr.rel (0) target = $region37
    $region36: #{tpu_custom_call.1} parent=1 // pred_region
      %255 = dma.done [#allocation4], 32
    $region37: #{tpu_custom_call.1} parent=1 // pred_fallthru
      _
    %256 = vsyncpa [#allocation4], 1

</llo_original>
